<compile_context>
chip_gen: v7x
topology: tpu7x:2x2x1
jax: 0.10.0
libtpu: 0.0.40
codegen_flags: <defaults>
</compile_context>

<pallas_src>
import jax
import jax.numpy as jnp
from jax.experimental import pallas as pl
from jax.experimental.pallas import tpu as pltpu


_IN_DIMS = (8, 6, 4)   # fan-in of linear1 / linear2 / linear3


def mlp_kernel(x_ref, wb_ref, o_ref):
    # x_ref : [8, TB]    features on sublanes, batch tile on lanes (f32 or bf16)
    # wb_ref: [3, 8, 16] packed f32 weights: [:, :, :8] = W (zero-padded), [:, :, 8] = b
    # o_ref : [1, TB]
    h = x_ref[...].astype(jnp.float32)     # in-kernel math stays f32
    wb = wb_ref[...]
    for layer, d_in in enumerate(_IN_DIMS):          # static unroll, 3 tiny layers
        w = wb[layer, :, :8]                         # [8, 8]
        b = wb[layer, :, 8:9]                        # [8, 1]
        # Unrolled VPU broadcast-FMA instead of an MXU dot: an [8,8]@[8,TB]
        # contraction uses <1% of the MXU and default-precision jnp.dot would
        # truncate f32 operands to bf16; the VALU has slack and is exact f32.
        acc = jnp.broadcast_to(b, h.shape)           # [8, TB]
        for i in range(d_in):
            acc = acc + w[:, i:i + 1] * h[i:i + 1, :]
        # sigmoid(z) == 0.5 * (tanh(0.5*z) + 1): a single EUP op, no exp + divide.
        h = 0.5 * (jnp.tanh(0.5 * acc) + 1.0)
    o_ref[...] = h[:1, :].astype(o_ref.dtype)        # only row 0 is the real output


def pack_params(w1, b1, w2, b2, w3, b3):
    """Pack torch-layout params (W:[out,in], b:[out]) into one [3,8,16] f32 slab."""
    wb = jnp.zeros((3, 8, 16), jnp.float32)
    for layer, (w, b) in enumerate(((w1, b1), (w2, b2), (w3, b3))):
        o, i = w.shape
        wb = wb.at[layer, :o, :i].set(w.astype(jnp.float32))
        wb = wb.at[layer, :o, 8].set(b.astype(jnp.float32))
    return wb


def _round_up(n, m):
    return ((n + m - 1) // m) * m


def mlp_forward(x, w1, b1, w2, b2, w3, b3, *,
                max_tb=8192, operand_dtype=jnp.bfloat16):
    """x: [B, 8] f32 -> [B, 1] f32, matching the PyTorch module."""
    B = x.shape[0]

    # Batch tile: as large as possible (amortize per-grid-step overhead, lane-dense
    # stores), but keep >= 4 tiles so the "parallel" axis still gives both v7x
    # TensorCores >= 2 tiles each, plus double-buffered DMA/compute overlap.
    if B <= 128:
        tb = B                                        # block == full array dims
    else:
        tb = max(128, min(max_tb, _round_up(pl.cdiv(B, 4), 128)))
    n_tiles = pl.cdiv(B, tb)

    # Layout plumbing: batch onto the 128-lane axis.  XLA fuses the transpose with
    # the (optional) bf16 downcast, so the slab written to HBM -- and the kernel's
    # input DMA -- is half the bytes.  No pad: Pallas masks the partial last block.
    xt = x.T.astype(operand_dtype)                    # [8, B]
    wb = pack_params(w1, b1, w2, b2, w3, b3)          # [3, 8, 16]

    itemsize = jnp.dtype(operand_dtype).itemsize
    cost = pl.CostEstimate(
        flops=2 * (8 * 6 + 6 * 4 + 4 * 1) * B,
        transcendentals=(6 + 4 + 1) * B,
        bytes_accessed=B * 8 * itemsize + B * 4 + 3 * 8 * 16 * 4,
    )

    out = pl.pallas_call(
        mlp_kernel,
        out_shape=jax.ShapeDtypeStruct((1, B), jnp.float32),
        grid_spec=pltpu.PrefetchScalarGridSpec(
            num_scalar_prefetch=0,
            grid=(n_tiles,),
            in_specs=[
                pl.BlockSpec((8, tb), lambda i: (0, i)),        # x tile follows grid
                pl.BlockSpec((3, 8, 16), lambda i: (0, 0, 0)),  # weights stay VMEM-resident
            ],
            out_specs=pl.BlockSpec((1, tb), lambda i: (0, i)),
        ),
        compiler_params=pltpu.CompilerParams(
            dimension_semantics=("parallel",),        # shard batch tiles across TCs (v7x)
            vmem_limit_bytes=32 * 1024 * 1024,        # safe on v5e/v6e/v7x
        ),
        cost_estimate=cost,
    )(xt, wb)

    return out.T                                      # [B, 1]


def init_params(key):
    # Deterministic PyTorch-Linear-style init: U(-1/sqrt(fan_in), +1/sqrt(fan_in)),
    # torch layout: W [out, in], b [out].
    dims = [(8, 6), (6, 4), (4, 1)]
    params = []
    for fin, fout in dims:
        kw, kb, key = jax.random.split(key, 3)
        bound = 1.0 / (fin ** 0.5)
        w = jax.random.uniform(kw, (fout, fin), jnp.float32, -bound, bound)
        b = jax.random.uniform(kb, (fout,), jnp.float32, -bound, bound)
        params += [w, b]
    return params


def reference_forward(x, w1, b1, w2, b2, w3, b3):
    # Exact-f32 reference (what the torch module computes); precision=HIGHEST avoids
    # XLA's default bf16 operand truncation on the TPU MXU.
    hi = jax.lax.Precision.HIGHEST
    h = jax.nn.sigmoid(jnp.dot(x, w1.T, precision=hi) + b1)
    h = jax.nn.sigmoid(jnp.dot(h, w2.T, precision=hi) + b2)
    return jax.nn.sigmoid(jnp.dot(h, w3.T, precision=hi) + b3)


if __name__ == "__main__":
    key = jax.random.PRNGKey(0)
    kx, kp = jax.random.split(key)

    B = 300           # deliberately NOT a multiple of 128: exercises the masked
                      # partial-tile path now that the explicit pad is gone
    x = jax.random.normal(kx, (B, 8), dtype=jnp.float32)
    params = init_params(kp)

    ref = reference_forward(x, *params)

    # Exact-f32 operand path: same math as the torch module (VPU FMA, f32 throughout).
    out_f32 = jax.block_until_ready(
        mlp_forward(x, *params, operand_dtype=jnp.float32))
    assert out_f32.shape == (B, 1), out_f32.shape
    assert jnp.allclose(out_f32, ref, atol=3e-5, rtol=3e-5), "f32 path mismatch"

    # Default bf16 operand-DMA path: halves input HBM bytes; in-kernel math stays f32.
    out_bf16 = jax.block_until_ready(mlp_forward(x, *params))
    assert out_bf16.shape == (B, 1), out_bf16.shape
    assert jnp.allclose(out_bf16, ref, atol=5e-3, rtol=0.0), "bf16 path mismatch"

    print("KERNEL_OK")
</pallas_src>

<mosaic_0001>
module attributes {stable_mosaic.version = 11 : i64} {
  func.func @mlp_kernel(%arg0: i32, %arg1: memref<8x128xf32, #tpu.memory_space<vmem>>, %arg2: memref<3x8x16xf32, #tpu.memory_space<vmem>>, %arg3: memref<1x128xf32, #tpu.memory_space<vmem>>) attributes {dimension_semantics = [#tpu.dimension_semantics<parallel>], iteration_bounds = array<i64: 3>, scalar_prefetch = 0 : i64, scratch_operands = 0 : i64, tpu.core_type = #tpu.core_type<tc>, window_params = [{transform_indices = @transform_0, window_bounds = array<i64: 8, 128>}, {pipeline_mode = #tpu.pipeline_mode<synchronous>, transform_indices = @transform_1, window_bounds = array<i64: 3, 8, 16>}, {transform_indices = @transform_2, window_bounds = array<i64: 1, 128>}]} {
    %c0 = arith.constant 0 : index
    %c0_0 = arith.constant 0 : index
    %0 = vector.load %arg1[%c0, %c0_0] : memref<8x128xf32, #tpu.memory_space<vmem>>, vector<8x128xf32>
    %c0_1 = arith.constant 0 : index
    %c0_2 = arith.constant 0 : index
    %c0_3 = arith.constant 0 : index
    %1 = vector.load %arg2[%c0_1, %c0_2, %c0_3] : memref<3x8x16xf32, #tpu.memory_space<vmem>>, vector<3x8x16xf32>
    %2 = vector.extract_strided_slice %1 {offsets = [0, 0, 0], sizes = [1, 8, 8], strides = [1, 1, 1]} : vector<3x8x16xf32> to vector<1x8x8xf32>
    %3 = vector.shape_cast %2 : vector<1x8x8xf32> to vector<8x8xf32>
    %4 = vector.extract_strided_slice %1 {offsets = [0, 0, 8], sizes = [1, 8, 1], strides = [1, 1, 1]} : vector<3x8x16xf32> to vector<1x8x1xf32>
    %5 = vector.shape_cast %4 : vector<1x8x1xf32> to vector<8x1xf32>
    %6 = vector.shape_cast %5 : vector<8x1xf32> to vector<8x1xf32>
    %7 = vector.broadcast %6 : vector<8x1xf32> to vector<8x128xf32>
    %8 = vector.extract_strided_slice %3 {offsets = [0, 0], sizes = [8, 1], strides = [1, 1]} : vector<8x8xf32> to vector<8x1xf32>
    %9 = vector.extract_strided_slice %0 {offsets = [0, 0], sizes = [1, 128], strides = [1, 1]} : vector<8x128xf32> to vector<1x128xf32>
    %10 = vector.broadcast %8 : vector<8x1xf32> to vector<8x128xf32>
    %11 = vector.broadcast %9 : vector<1x128xf32> to vector<8x128xf32>
    %12 = arith.mulf %10, %11 : vector<8x128xf32>
    %13 = arith.addf %7, %12 : vector<8x128xf32>
    %14 = vector.extract_strided_slice %3 {offsets = [0, 1], sizes = [8, 1], strides = [1, 1]} : vector<8x8xf32> to vector<8x1xf32>
    %15 = vector.extract_strided_slice %0 {offsets = [1, 0], sizes = [1, 128], strides = [1, 1]} : vector<8x128xf32> to vector<1x128xf32>
    %16 = vector.broadcast %14 : vector<8x1xf32> to vector<8x128xf32>
    %17 = vector.broadcast %15 : vector<1x128xf32> to vector<8x128xf32>
    %18 = arith.mulf %16, %17 : vector<8x128xf32>
    %19 = arith.addf %13, %18 : vector<8x128xf32>
    %20 = vector.extract_strided_slice %3 {offsets = [0, 2], sizes = [8, 1], strides = [1, 1]} : vector<8x8xf32> to vector<8x1xf32>
    %21 = vector.extract_strided_slice %0 {offsets = [2, 0], sizes = [1, 128], strides = [1, 1]} : vector<8x128xf32> to vector<1x128xf32>
    %22 = vector.broadcast %20 : vector<8x1xf32> to vector<8x128xf32>
    %23 = vector.broadcast %21 : vector<1x128xf32> to vector<8x128xf32>
    %24 = arith.mulf %22, %23 : vector<8x128xf32>
    %25 = arith.addf %19, %24 : vector<8x128xf32>
    %26 = vector.extract_strided_slice %3 {offsets = [0, 3], sizes = [8, 1], strides = [1, 1]} : vector<8x8xf32> to vector<8x1xf32>
    %27 = vector.extract_strided_slice %0 {offsets = [3, 0], sizes = [1, 128], strides = [1, 1]} : vector<8x128xf32> to vector<1x128xf32>
    %28 = vector.broadcast %26 : vector<8x1xf32> to vector<8x128xf32>
    %29 = vector.broadcast %27 : vector<1x128xf32> to vector<8x128xf32>
    %30 = arith.mulf %28, %29 : vector<8x128xf32>
    %31 = arith.addf %25, %30 : vector<8x128xf32>
    %32 = vector.extract_strided_slice %3 {offsets = [0, 4], sizes = [8, 1], strides = [1, 1]} : vector<8x8xf32> to vector<8x1xf32>
    %33 = vector.extract_strided_slice %0 {offsets = [4, 0], sizes = [1, 128], strides = [1, 1]} : vector<8x128xf32> to vector<1x128xf32>
    %34 = vector.broadcast %32 : vector<8x1xf32> to vector<8x128xf32>
    %35 = vector.broadcast %33 : vector<1x128xf32> to vector<8x128xf32>
    %36 = arith.mulf %34, %35 : vector<8x128xf32>
    %37 = arith.addf %31, %36 : vector<8x128xf32>
    %38 = vector.extract_strided_slice %3 {offsets = [0, 5], sizes = [8, 1], strides = [1, 1]} : vector<8x8xf32> to vector<8x1xf32>
    %39 = vector.extract_strided_slice %0 {offsets = [5, 0], sizes = [1, 128], strides = [1, 1]} : vector<8x128xf32> to vector<1x128xf32>
    %40 = vector.broadcast %38 : vector<8x1xf32> to vector<8x128xf32>
    %41 = vector.broadcast %39 : vector<1x128xf32> to vector<8x128xf32>
    %42 = arith.mulf %40, %41 : vector<8x128xf32>
    %43 = arith.addf %37, %42 : vector<8x128xf32>
    %44 = vector.extract_strided_slice %3 {offsets = [0, 6], sizes = [8, 1], strides = [1, 1]} : vector<8x8xf32> to vector<8x1xf32>
    %45 = vector.extract_strided_slice %0 {offsets = [6, 0], sizes = [1, 128], strides = [1, 1]} : vector<8x128xf32> to vector<1x128xf32>
    %46 = vector.broadcast %44 : vector<8x1xf32> to vector<8x128xf32>
    %47 = vector.broadcast %45 : vector<1x128xf32> to vector<8x128xf32>
    %48 = arith.mulf %46, %47 : vector<8x128xf32>
    %49 = arith.addf %43, %48 : vector<8x128xf32>
    %50 = vector.extract_strided_slice %3 {offsets = [0, 7], sizes = [8, 1], strides = [1, 1]} : vector<8x8xf32> to vector<8x1xf32>
    %51 = vector.extract_strided_slice %0 {offsets = [7, 0], sizes = [1, 128], strides = [1, 1]} : vector<8x128xf32> to vector<1x128xf32>
    %52 = vector.broadcast %50 : vector<8x1xf32> to vector<8x128xf32>
    %53 = vector.broadcast %51 : vector<1x128xf32> to vector<8x128xf32>
    %54 = arith.mulf %52, %53 : vector<8x128xf32>
    %55 = arith.addf %49, %54 : vector<8x128xf32>
    %cst = arith.constant 5.000000e-01 : f32
    %56 = vector.broadcast %cst : f32 to vector<8x128xf32>
    %57 = arith.mulf %56, %55 : vector<8x128xf32>
    %58 = math.tanh %57 : vector<8x128xf32>
    %cst_4 = arith.constant 1.000000e+00 : f32
    %59 = vector.broadcast %cst_4 : f32 to vector<8x128xf32>
    %60 = arith.addf %58, %59 : vector<8x128xf32>
    %cst_5 = arith.constant 5.000000e-01 : f32
    %61 = vector.broadcast %cst_5 : f32 to vector<8x128xf32>
    %62 = arith.mulf %61, %60 : vector<8x128xf32>
    %63 = vector.extract_strided_slice %1 {offsets = [1, 0, 0], sizes = [1, 8, 8], strides = [1, 1, 1]} : vector<3x8x16xf32> to vector<1x8x8xf32>
    %64 = vector.shape_cast %63 : vector<1x8x8xf32> to vector<8x8xf32>
    %65 = vector.extract_strided_slice %1 {offsets = [1, 0, 8], sizes = [1, 8, 1], strides = [1, 1, 1]} : vector<3x8x16xf32> to vector<1x8x1xf32>
    %66 = vector.shape_cast %65 : vector<1x8x1xf32> to vector<8x1xf32>
    %67 = vector.shape_cast %66 : vector<8x1xf32> to vector<8x1xf32>
    %68 = vector.broadcast %67 : vector<8x1xf32> to vector<8x128xf32>
    %69 = vector.extract_strided_slice %64 {offsets = [0, 0], sizes = [8, 1], strides = [1, 1]} : vector<8x8xf32> to vector<8x1xf32>
    %70 = vector.extract_strided_slice %62 {offsets = [0, 0], sizes = [1, 128], strides = [1, 1]} : vector<8x128xf32> to vector<1x128xf32>
    %71 = vector.broadcast %69 : vector<8x1xf32> to vector<8x128xf32>
    %72 = vector.broadcast %70 : vector<1x128xf32> to vector<8x128xf32>
    %73 = arith.mulf %71, %72 : vector<8x128xf32>
    %74 = arith.addf %68, %73 : vector<8x128xf32>
    %75 = vector.extract_strided_slice %64 {offsets = [0, 1], sizes = [8, 1], strides = [1, 1]} : vector<8x8xf32> to vector<8x1xf32>
    %76 = vector.extract_strided_slice %62 {offsets = [1, 0], sizes = [1, 128], strides = [1, 1]} : vector<8x128xf32> to vector<1x128xf32>
    %77 = vector.broadcast %75 : vector<8x1xf32> to vector<8x128xf32>
    %78 = vector.broadcast %76 : vector<1x128xf32> to vector<8x128xf32>
    %79 = arith.mulf %77, %78 : vector<8x128xf32>
    %80 = arith.addf %74, %79 : vector<8x128xf32>
    %81 = vector.extract_strided_slice %64 {offsets = [0, 2], sizes = [8, 1], strides = [1, 1]} : vector<8x8xf32> to vector<8x1xf32>
    %82 = vector.extract_strided_slice %62 {offsets = [2, 0], sizes = [1, 128], strides = [1, 1]} : vector<8x128xf32> to vector<1x128xf32>
    %83 = vector.broadcast %81 : vector<8x1xf32> to vector<8x128xf32>
    %84 = vector.broadcast %82 : vector<1x128xf32> to vector<8x128xf32>
    %85 = arith.mulf %83, %84 : vector<8x128xf32>
    %86 = arith.addf %80, %85 : vector<8x128xf32>
    %87 = vector.extract_strided_slice %64 {offsets = [0, 3], sizes = [8, 1], strides = [1, 1]} : vector<8x8xf32> to vector<8x1xf32>
    %88 = vector.extract_strided_slice %62 {offsets = [3, 0], sizes = [1, 128], strides = [1, 1]} : vector<8x128xf32> to vector<1x128xf32>
    %89 = vector.broadcast %87 : vector<8x1xf32> to vector<8x128xf32>
    %90 = vector.broadcast %88 : vector<1x128xf32> to vector<8x128xf32>
    %91 = arith.mulf %89, %90 : vector<8x128xf32>
    %92 = arith.addf %86, %91 : vector<8x128xf32>
    %93 = vector.extract_strided_slice %64 {offsets = [0, 4], sizes = [8, 1], strides = [1, 1]} : vector<8x8xf32> to vector<8x1xf32>
    %94 = vector.extract_strided_slice %62 {offsets = [4, 0], sizes = [1, 128], strides = [1, 1]} : vector<8x128xf32> to vector<1x128xf32>
    %95 = vector.broadcast %93 : vector<8x1xf32> to vector<8x128xf32>
    %96 = vector.broadcast %94 : vector<1x128xf32> to vector<8x128xf32>
    %97 = arith.mulf %95, %96 : vector<8x128xf32>
    %98 = arith.addf %92, %97 : vector<8x128xf32>
    %99 = vector.extract_strided_slice %64 {offsets = [0, 5], sizes = [8, 1], strides = [1, 1]} : vector<8x8xf32> to vector<8x1xf32>
    %100 = vector.extract_strided_slice %62 {offsets = [5, 0], sizes = [1, 128], strides = [1, 1]} : vector<8x128xf32> to vector<1x128xf32>
    %101 = vector.broadcast %99 : vector<8x1xf32> to vector<8x128xf32>
    %102 = vector.broadcast %100 : vector<1x128xf32> to vector<8x128xf32>
    %103 = arith.mulf %101, %102 : vector<8x128xf32>
    %104 = arith.addf %98, %103 : vector<8x128xf32>
    %cst_6 = arith.constant 5.000000e-01 : f32
    %105 = vector.broadcast %cst_6 : f32 to vector<8x128xf32>
    %106 = arith.mulf %105, %104 : vector<8x128xf32>
    %107 = math.tanh %106 : vector<8x128xf32>
    %cst_7 = arith.constant 1.000000e+00 : f32
    %108 = vector.broadcast %cst_7 : f32 to vector<8x128xf32>
    %109 = arith.addf %107, %108 : vector<8x128xf32>
    %cst_8 = arith.constant 5.000000e-01 : f32
    %110 = vector.broadcast %cst_8 : f32 to vector<8x128xf32>
    %111 = arith.mulf %110, %109 : vector<8x128xf32>
    %112 = vector.extract_strided_slice %1 {offsets = [2, 0, 0], sizes = [1, 8, 8], strides = [1, 1, 1]} : vector<3x8x16xf32> to vector<1x8x8xf32>
    %113 = vector.shape_cast %112 : vector<1x8x8xf32> to vector<8x8xf32>
    %114 = vector.extract_strided_slice %1 {offsets = [2, 0, 8], sizes = [1, 8, 1], strides = [1, 1, 1]} : vector<3x8x16xf32> to vector<1x8x1xf32>
    %115 = vector.shape_cast %114 : vector<1x8x1xf32> to vector<8x1xf32>
    %116 = vector.shape_cast %115 : vector<8x1xf32> to vector<8x1xf32>
    %117 = vector.broadcast %116 : vector<8x1xf32> to vector<8x128xf32>
    %118 = vector.extract_strided_slice %113 {offsets = [0, 0], sizes = [8, 1], strides = [1, 1]} : vector<8x8xf32> to vector<8x1xf32>
    %119 = vector.extract_strided_slice %111 {offsets = [0, 0], sizes = [1, 128], strides = [1, 1]} : vector<8x128xf32> to vector<1x128xf32>
    %120 = vector.broadcast %118 : vector<8x1xf32> to vector<8x128xf32>
    %121 = vector.broadcast %119 : vector<1x128xf32> to vector<8x128xf32>
    %122 = arith.mulf %120, %121 : vector<8x128xf32>
    %123 = arith.addf %117, %122 : vector<8x128xf32>
    %124 = vector.extract_strided_slice %113 {offsets = [0, 1], sizes = [8, 1], strides = [1, 1]} : vector<8x8xf32> to vector<8x1xf32>
    %125 = vector.extract_strided_slice %111 {offsets = [1, 0], sizes = [1, 128], strides = [1, 1]} : vector<8x128xf32> to vector<1x128xf32>
    %126 = vector.broadcast %124 : vector<8x1xf32> to vector<8x128xf32>
    %127 = vector.broadcast %125 : vector<1x128xf32> to vector<8x128xf32>
    %128 = arith.mulf %126, %127 : vector<8x128xf32>
    %129 = arith.addf %123, %128 : vector<8x128xf32>
    %130 = vector.extract_strided_slice %113 {offsets = [0, 2], sizes = [8, 1], strides = [1, 1]} : vector<8x8xf32> to vector<8x1xf32>
    %131 = vector.extract_strided_slice %111 {offsets = [2, 0], sizes = [1, 128], strides = [1, 1]} : vector<8x128xf32> to vector<1x128xf32>
    %132 = vector.broadcast %130 : vector<8x1xf32> to vector<8x128xf32>
    %133 = vector.broadcast %131 : vector<1x128xf32> to vector<8x128xf32>
    %134 = arith.mulf %132, %133 : vector<8x128xf32>
    %135 = arith.addf %129, %134 : vector<8x128xf32>
    %136 = vector.extract_strided_slice %113 {offsets = [0, 3], sizes = [8, 1], strides = [1, 1]} : vector<8x8xf32> to vector<8x1xf32>
    %137 = vector.extract_strided_slice %111 {offsets = [3, 0], sizes = [1, 128], strides = [1, 1]} : vector<8x128xf32> to vector<1x128xf32>
    %138 = vector.broadcast %136 : vector<8x1xf32> to vector<8x128xf32>
    %139 = vector.broadcast %137 : vector<1x128xf32> to vector<8x128xf32>
    %140 = arith.mulf %138, %139 : vector<8x128xf32>
    %141 = arith.addf %135, %140 : vector<8x128xf32>
    %cst_9 = arith.constant 5.000000e-01 : f32
    %142 = vector.broadcast %cst_9 : f32 to vector<8x128xf32>
    %143 = arith.mulf %142, %141 : vector<8x128xf32>
    %144 = math.tanh %143 : vector<8x128xf32>
    %cst_10 = arith.constant 1.000000e+00 : f32
    %145 = vector.broadcast %cst_10 : f32 to vector<8x128xf32>
    %146 = arith.addf %144, %145 : vector<8x128xf32>
    %cst_11 = arith.constant 5.000000e-01 : f32
    %147 = vector.broadcast %cst_11 : f32 to vector<8x128xf32>
    %148 = arith.mulf %147, %146 : vector<8x128xf32>
    %149 = vector.extract_strided_slice %148 {offsets = [0, 0], sizes = [1, 128], strides = [1, 1]} : vector<8x128xf32> to vector<1x128xf32>
    %c0_12 = arith.constant 0 : index
    %c0_13 = arith.constant 0 : index
    %150 = vector.load %arg3[%c0_12, %c0_13] : memref<1x128xf32, #tpu.memory_space<vmem>>, vector<1x128xf32>
    tpu.vector_store %arg3[%c0_12, %c0_13], %149 {strides = array<i32>} : memref<1x128xf32, #tpu.memory_space<vmem>>, vector<1x128xf32>,
    return
  }
  func.func @transform_0(%arg0: i32) -> (i32, i32) {
    %c0_i32 = arith.constant 0 : i32
    %c0_i32_0 = arith.constant 0 : i32
    return %c0_i32, %arg0 : i32, i32
  }
  func.func @transform_1(%arg0: i32) -> (i32, i32, i32) {
    %c0_i32 = arith.constant 0 : i32
    %c0_i32_0 = arith.constant 0 : i32
    %c0_i32_1 = arith.constant 0 : i32
    %c0_i32_2 = arith.constant 0 : i32
    return %c0_i32, %c0_i32_0, %c0_i32_1 : i32, i32, i32
  }
  func.func @transform_2(%arg0: i32) -> (i32, i32) {
    %c0_i32 = arith.constant 0 : i32
    %c0_i32_0 = arith.constant 0 : i32
    return %c0_i32, %arg0 : i32, i32
  }
}

</mosaic_0001>

<llo_original>
// kernel: tpu_custom_call.1
$region0: #{tpu_custom_call.1}
  #allocation0 [shape = 'u32[]', space=smem, size = 0x4, offset = 0x4, fixed_abs, tag = 'smem constant byte address 0x4 - core index']
  #allocation1 [shape = 'u32[144,128]{1,0:T(1,128)}', space=vmem, size = 0x12000, scoped, tag = 'internal scratch']
  %s0 = inlined_call_operand.hbm [shape: f32[8,300], index: 0, kind: input, shape index: {}]
  %s1 = inlined_call_operand.hbm [shape: f32[3,8,16], index: 1, kind: input, shape index: {}]
  %s2 = inlined_call_operand.hbm [shape: f32[1,300], index: 2, kind: output, shape index: {}]
  %s3 = sld [smem:[#allocation0]]
  $region49: #{tpu_custom_call.1} parent=0
    _
  %s5 = ssub.s32 1, %s3
  %s6 = scalar_select 0, %s5, %s3
  $region1: #{tpu_custom_call.1} parent=0
    #allocation2 [shape = 'u8[8192]{0}', space=vmem, size = 0x2000, scoped, tag = 'input window, operand 0']
    #allocation3 [shape = 's32[2]{0}', space=sflag, size = 0x8, scoped, tag = 'scoped memory for tpu_custom_call.1']
    #allocation4 [shape = 's32[2]{0}', space=sflag, size = 0x8, scoped, tag = 'scoped memory for tpu_custom_call.1']
    #allocation5 [shape = 'u8[12288]{0}', space=vmem, size = 0x3000, scoped, tag = 'input window, operand 1, single buffered']
    #allocation6 [shape = 's32[1]{0}', space=sflag, size = 0x4, scoped, tag = 'scoped memory for tpu_custom_call.1']
    #allocation7 [shape = 'u8[1024]{0}', space=vmem, size = 0x400, scoped, tag = 'output window, operand 0']
    %7 = vsyncpa [#allocation3], 0
    %s8 = scalar_lea.sflag [#allocation3], 1
    %9 = vsyncpa %s8, 0
    %10 = vsyncpa [#allocation6], 0
    %11 = vsyncpa [#allocation4], 0
    %s12 = scalar_lea.sflag [#allocation4], 1
    %13 = vsyncpa %s12, 0
    loop: start=0, step=1, limit=5
    $region2: #{tpu_custom_call.1} parent=1 // loop_pre_header
      _
    $region3: #{tpu_custom_call.1} parent=1 // loop_header
      %s15 = sphi 0, %s19
      %p16 = scmp.ge.s32.totalorder %s15, 5
      %s25 = sphi 0, %s27
      %s28 = sphi 0, %s25
      %s29 = sphi 0, %s28
      %s45 = sphi 0, %s29
      %s49 = sphi 0, %s49
      %s51 = sphi 0, %s49
      %s52 = sphi 0, %s51
      %s66 = sphi 0, %s52
      %s72 = sphi 0, %s74
      %s75 = sphi 0, %s72
      %s76 = sphi 0, %s75
      %s92 = sphi 0, %s76
    $region4: #{tpu_custom_call.1} parent=1 // loop_header_branch
      %18 = sbr.rel (%p16) target = $region8
    $region5: #{tpu_custom_call.1} parent=1 // loop_body
      %s20 = ssub.s32 %s15, 1
      %s21 = ssub.s32 %s15, 2
      %s22 = sadd.s32 %s15, 1
      %s23 = ssub.s32 %s15, %s22
      %p24 = scmp.eq.s32.totalorder %s23, 0
      %s26 = sadd.s32 %s25, 1
      %s27 = scalar_select %p24, %s25, %s26
      %p30 = pneg %p24
      %p31 = scmp.eq.s32.totalorder %s15, 2
      %p32 = por %p30, %p31
      %p33 = scmp.ne.s32.totalorder %s25, %s28
      %p34 = scmp.eq.s32.totalorder %s15, 0
      %p35 = por %p33, %p34
      %p36 = scmp.ne.s32.totalorder %s25, %s28
      %p37 = scmp.eq.s32.totalorder %s20, 2
      %p38 = por %p36, %p37
      %p39 = scmp.ne.s32.totalorder %s28, %s29
      %p40 = scmp.eq.s32.totalorder %s20, 0
      %p41 = por %p39, %p40
      %p42 = scmp.ne.s32.totalorder %s28, %s29
      %p43 = scmp.eq.s32.totalorder %s21, 2
      %p44 = por %p42, %p43
      %p46 = scmp.ne.s32.totalorder %s29, %s45
      %p47 = scmp.eq.s32.totalorder %s21, 0
      %p48 = por %p46, %p47
      %s50 = sadd.s32 %s49, 1
      %p53 = scmp.eq.s32.totalorder %s15, 2
      %p54 = scmp.ne.s32.totalorder %s49, %s51
      %p55 = scmp.eq.s32.totalorder %s15, 0
      %p56 = por %p54, %p55
      %p57 = scmp.ne.s32.totalorder %s49, %s51
      %p58 = scmp.eq.s32.totalorder %s20, 2
      %p59 = por %p57, %p58
      %p60 = scmp.ne.s32.totalorder %s51, %s52
      %p61 = scmp.eq.s32.totalorder %s20, 0
      %p62 = por %p60, %p61
      %p63 = scmp.ne.s32.totalorder %s51, %s52
      %p64 = scmp.eq.s32.totalorder %s21, 2
      %p65 = por %p63, %p64
      %p67 = scmp.ne.s32.totalorder %s52, %s66
      %p68 = scmp.eq.s32.totalorder %s21, 0
      %p69 = por %p67, %p68
      %s70 = ssub.s32 %s15, %s22
      %p71 = scmp.eq.s32.totalorder %s70, 0
      %s73 = sadd.s32 %s72, 1
      %s74 = scalar_select %p71, %s72, %s73
      %p77 = pneg %p71
      %p78 = scmp.eq.s32.totalorder %s15, 2
      %p79 = por %p77, %p78
      %p80 = scmp.ne.s32.totalorder %s72, %s75
      %p81 = scmp.eq.s32.totalorder %s15, 0
      %p82 = por %p80, %p81
      %p83 = scmp.ne.s32.totalorder %s72, %s75
      %p84 = scmp.eq.s32.totalorder %s20, 2
      %p85 = por %p83, %p84
      %p86 = scmp.ne.s32.totalorder %s75, %s76
      %p87 = scmp.eq.s32.totalorder %s20, 0
      %p88 = por %p86, %p87
      %p89 = scmp.ne.s32.totalorder %s75, %s76
      %p90 = scmp.eq.s32.totalorder %s21, 2
      %p91 = por %p89, %p90
      %p93 = scmp.ne.s32.totalorder %s76, %s92
      %p94 = scmp.eq.s32.totalorder %s21, 0
      %p95 = por %p93, %p94
      %p96 = scmp.le.s32.totalorder 1, %s15
      %p97 = scmp.lt.s32.totalorder %s15, 4
      %p98 = pnand %p96, %p97
      %p99 = pneg %p98
      // Predicated region
      $region9: #{tpu_custom_call.1} parent=5 // pred_check
        _
      $region10: #{tpu_custom_call.1} parent=5 // pred_check_branch
        %101 = sbr.rel (%p98) target = $region12
      $region11: #{tpu_custom_call.1} parent=5 // pred_region
        %s102 = ssub.s32 %s15, 1
        // Predicated region
        $region13: #{tpu_custom_call.1} parent=11 // pred_check
          %p103 = pneg %p62
        $region14: #{tpu_custom_call.1} parent=11 // pred_check_branch
          %105 = sbr.rel (%p103) target = $region16
        $region15: #{tpu_custom_call.1} parent=11 // pred_region
          %s107 = ssub.s32 384, 384
          %108 = vsyncadd [#allocation6], %s107
          %s109 = sshll.u32 [#allocation5], 4
          %s110 = int_to_ptr.vmem [resolvable:$true] %s109
          %115 = dma.hbm_to_vmem [thread:$0]  %s1, 384, %s110, [#allocation6], 128, 128, 8
        $region16: #{tpu_custom_call.1} parent=11 // pred_fallthru
          _
      $region12: #{tpu_custom_call.1} parent=5 // pred_fallthru
        _
      %p116 = scmp.lt.s32.totalorder %s15, 3
      // Predicated region
      $region17: #{tpu_custom_call.1} parent=5 // pred_check
        %p117 = pneg %p116
      $region18: #{tpu_custom_call.1} parent=5 // pred_check_branch
        %119 = sbr.rel (%p117) target = $region20
      $region19: #{tpu_custom_call.1} parent=5 // pred_region
        // Predicated region
        $region21: #{tpu_custom_call.1} parent=19 // pred_check
          %p120 = pneg %p35
        $region22: #{tpu_custom_call.1} parent=19 // pred_check_branch
          %122 = sbr.rel (%p120) target = $region24
        $region23: #{tpu_custom_call.1} parent=19 // pred_region
          %s123 = sand.u32 %s25, 1
          %s124 = scalar_lea.sflag [#allocation3], %s123
          %s125 = sand.u32 %s25, 1
          %s126 = smul.addr %s125, 8
          %s127 = scalar_lea.vmem [#allocation2], %s126
          %s129 = ssub.s32 128, 128
          %130 = vsyncadd %s124, %s129
          %s131 = smul.addr %s15, 128
          %s132 = scalar_lea.hbm %s0, %s131
          %s134 = sshll.u32 %s127, 4
          %s135 = int_to_ptr.vmem [resolvable:$true] %s134
          %137 = dma.hbm_to_vmem [thread:$0]  %s132, 128, %s135, %s124
        $region24: #{tpu_custom_call.1} parent=19 // pred_fallthru
          _
      $region20: #{tpu_custom_call.1} parent=5 // pred_fallthru
        _
      %p138 = scmp.le.s32.totalorder 1, %s15
      %p139 = scmp.lt.s32.totalorder %s15, 4
      %p140 = pnand %p138, %p139
      %p141 = pneg %p140
      // Predicated region
      $region25: #{tpu_custom_call.1} parent=5 // pred_check
        _
      $region26: #{tpu_custom_call.1} parent=5 // pred_check_branch
        %143 = sbr.rel (%p140) target = $region28
      $region27: #{tpu_custom_call.1} parent=5 // pred_region
        %s144 = ssub.s32 %s15, 1
        %s145 = sand.u32 %s28, 1
        %s146 = scalar_lea.sflag [#allocation3], %s145
        %s147 = sand.u32 %s28, 1
        %s148 = smul.addr %s147, 8
        %s149 = scalar_lea.vmem [#allocation2], %s148
        // Predicated region
        $region29: #{tpu_custom_call.1} parent=27 // pred_check
          %p150 = pneg %p41
        $region30: #{tpu_custom_call.1} parent=27 // pred_check_branch
          %152 = sbr.rel (%p150) target = $region32
        $region31: #{tpu_custom_call.1} parent=27 // pred_region
          %153 = dma.done %s146, 128
        $region32: #{tpu_custom_call.1} parent=27 // pred_fallthru
          _
        // Predicated region
        $region33: #{tpu_custom_call.1} parent=27 // pred_check
          %p154 = pneg %p62
        $region34: #{tpu_custom_call.1} parent=27 // pred_check_branch
          %156 = sbr.rel (%p154) target = $region36
        $region35: #{tpu_custom_call.1} parent=27 // pred_region
          %157 = dma.done [#allocation6], 384
        $region36: #{tpu_custom_call.1} parent=27 // pred_fallthru
          _
        %s158 = sand.u32 %s28, 1
        %s159 = scalar_lea.sflag [#allocation3], %s158
        %s160 = sand.u32 %s28, 1
        %s161 = smul.addr %s160, 8
        %s162 = scalar_lea.vmem [#allocation2], %s161
        %p163 = pneg %p41
        %p164 = pneg %p38
        %p165 = pneg %p62
        %p166 = pneg %p59
        %p167 = pneg %p88
        %p168 = pneg %p85
        %s169 = sand.u32 %s75, 1
        %s170 = scalar_lea.sflag [#allocation4], %s169
        %s171 = sand.u32 %s75, 1
        %s172 = scalar_lea.vmem [#allocation7], %s171
        %v173 = vld [vmem:[%s149] sm:$0xff]
        %v174 = vld [vmem:[#allocation5] sm:$0xff]
        %v175 = vld [vmem:[#allocation5 + $0x8] sm:$0xff]
        %v176 = vld [vmem:[#allocation5 + $0x10] sm:$0xff]
        %178 = vset.pattern.permute.xlu0 8
        %179 = vperm.xlu0 %178, %v174
        %v180 = vpop.permute.xlu0 %179
        %182 = vset.pattern.permute.xlu0 0
        %183 = vperm.xlu0 %182, %v174
        %v184 = vpop.permute.xlu0 %183
        %v186 = vlaneseq
        %v187 = vshrl.u32 %v186, 7
        %v188 = vsub.s32 0, %v187
        %v189 = vrot.slane %v173, %v188
        %v190 = vmul.f32 %v184, %v189
        %v191 = vadd.f32 %v180, %v190
        %192 = vset.pattern.permute.xlu0 1
        %193 = vperm.xlu0 %192, %v174
        %v194 = vpop.permute.xlu0 %193
        %v196 = vlaneseq
        %v197 = vshrl.u32 %v196, 7
        %v198 = vsub.s32 1, %v197
        %v199 = vrot.slane %v173, %v198
        %v200 = vmul.f32 %v194, %v199
        %v201 = vadd.f32 %v191, %v200
        %202 = vset.pattern.permute.xlu0 2
        %203 = vperm.xlu0 %202, %v174
        %v204 = vpop.permute.xlu0 %203
        %v206 = vlaneseq
        %v207 = vshrl.u32 %v206, 7
        %v208 = vsub.s32 2, %v207
        %v209 = vrot.slane %v173, %v208
        %v210 = vmul.f32 %v204, %v209
        %v211 = vadd.f32 %v201, %v210
        %212 = vset.pattern.permute.xlu0 3
        %213 = vperm.xlu0 %212, %v174
        %v214 = vpop.permute.xlu0 %213
        %v216 = vlaneseq
        %v217 = vshrl.u32 %v216, 7
        %v218 = vsub.s32 3, %v217
        %v219 = vrot.slane %v173, %v218
        %v220 = vmul.f32 %v214, %v219
        %v221 = vadd.f32 %v211, %v220
        %222 = vset.pattern.permute.xlu0 4
        %223 = vperm.xlu0 %222, %v174
        %v224 = vpop.permute.xlu0 %223
        %v226 = vlaneseq
        %v227 = vshrl.u32 %v226, 7
        %v228 = vsub.s32 4, %v227
        %v229 = vrot.slane %v173, %v228
        %v230 = vmul.f32 %v224, %v229
        %v231 = vadd.f32 %v221, %v230
        %232 = vset.pattern.permute.xlu0 5
        %233 = vperm.xlu0 %232, %v174
        %v234 = vpop.permute.xlu0 %233
        %v236 = vlaneseq
        %v237 = vshrl.u32 %v236, 7
        %v238 = vsub.s32 5, %v237
        %v239 = vrot.slane %v173, %v238
        %v240 = vmul.f32 %v234, %v239
        %v241 = vadd.f32 %v231, %v240
        %242 = vset.pattern.permute.xlu0 6
        %243 = vperm.xlu0 %242, %v174
        %v244 = vpop.permute.xlu0 %243
        %v246 = vlaneseq
        %v247 = vshrl.u32 %v246, 7
        %v248 = vsub.s32 6, %v247
        %v249 = vrot.slane %v173, %v248
        %v250 = vmul.f32 %v244, %v249
        %v251 = vadd.f32 %v241, %v250
        %252 = vset.pattern.permute.xlu0 7
        %253 = vperm.xlu0 %252, %v174
        %v254 = vpop.permute.xlu0 %253
        %v256 = vlaneseq
        %v257 = vshrl.u32 %v256, 7
        %v258 = vsub.s32 7, %v257
        %v259 = vrot.slane %v173, %v258
        %v260 = vmul.f32 %v254, %v259
        %v261 = vadd.f32 %v251, %v260
        %v262 = vmul.f32 %v261, 0.5
        %v263 = vtanh.pop %v262
        %v264 = vadd.f32 %v263, 1.0
        %v265 = vmul.f32 %v264, 0.5
        %267 = vset.pattern.permute.xlu0 8
        %268 = vperm.xlu0 %267, %v175
        %v269 = vpop.permute.xlu0 %268
        %271 = vset.pattern.permute.xlu0 0
        %272 = vperm.xlu0 %271, %v175
        %v273 = vpop.permute.xlu0 %272
        %v275 = vlaneseq
        %v276 = vshrl.u32 %v275, 7
        %v277 = vsub.s32 0, %v276
        %v278 = vrot.slane %v265, %v277
        %v279 = vmul.f32 %v273, %v278
        %v280 = vadd.f32 %v269, %v279
        %281 = vset.pattern.permute.xlu0 1
        %282 = vperm.xlu0 %281, %v175
        %v283 = vpop.permute.xlu0 %282
        %v285 = vlaneseq
        %v286 = vshrl.u32 %v285, 7
        %v287 = vsub.s32 1, %v286
        %v288 = vrot.slane %v265, %v287
        %v289 = vmul.f32 %v283, %v288
        %v290 = vadd.f32 %v280, %v289
        %291 = vset.pattern.permute.xlu0 2
        %292 = vperm.xlu0 %291, %v175
        %v293 = vpop.permute.xlu0 %292
        %v295 = vlaneseq
        %v296 = vshrl.u32 %v295, 7
        %v297 = vsub.s32 2, %v296
        %v298 = vrot.slane %v265, %v297
        %v299 = vmul.f32 %v293, %v298
        %v300 = vadd.f32 %v290, %v299
        %301 = vset.pattern.permute.xlu0 3
        %302 = vperm.xlu0 %301, %v175
        %v303 = vpop.permute.xlu0 %302
        %v305 = vlaneseq
        %v306 = vshrl.u32 %v305, 7
        %v307 = vsub.s32 3, %v306
        %v308 = vrot.slane %v265, %v307
        %v309 = vmul.f32 %v303, %v308
        %v310 = vadd.f32 %v300, %v309
        %311 = vset.pattern.permute.xlu0 4
        %312 = vperm.xlu0 %311, %v175
        %v313 = vpop.permute.xlu0 %312
        %v315 = vlaneseq
        %v316 = vshrl.u32 %v315, 7
        %v317 = vsub.s32 4, %v316
        %v318 = vrot.slane %v265, %v317
        %v319 = vmul.f32 %v313, %v318
        %v320 = vadd.f32 %v310, %v319
        %321 = vset.pattern.permute.xlu0 5
        %322 = vperm.xlu0 %321, %v175
        %v323 = vpop.permute.xlu0 %322
        %v325 = vlaneseq
        %v326 = vshrl.u32 %v325, 7
        %v327 = vsub.s32 5, %v326
        %v328 = vrot.slane %v265, %v327
        %v329 = vmul.f32 %v323, %v328
        %v330 = vadd.f32 %v320, %v329
        %v331 = vmul.f32 %v330, 0.5
        %v332 = vtanh.pop %v331
        %v333 = vadd.f32 %v332, 1.0
        %v334 = vmul.f32 %v333, 0.5
        %336 = vset.pattern.permute.xlu0 8
        %337 = vperm.xlu0 %336, %v176
        %v338 = vpop.permute.xlu0 %337
        %340 = vset.pattern.permute.xlu0 0
        %341 = vperm.xlu0 %340, %v176
        %v342 = vpop.permute.xlu0 %341
        %v344 = vlaneseq
        %v345 = vshrl.u32 %v344, 7
        %v346 = vsub.s32 0, %v345
        %v347 = vrot.slane %v334, %v346
        %v348 = vmul.f32 %v342, %v347
        %v349 = vadd.f32 %v338, %v348
        %350 = vset.pattern.permute.xlu0 1
        %351 = vperm.xlu0 %350, %v176
        %v352 = vpop.permute.xlu0 %351
        %v354 = vlaneseq
        %v355 = vshrl.u32 %v354, 7
        %v356 = vsub.s32 1, %v355
        %v357 = vrot.slane %v334, %v356
        %v358 = vmul.f32 %v352, %v357
        %v359 = vadd.f32 %v349, %v358
        %360 = vset.pattern.permute.xlu0 2
        %361 = vperm.xlu0 %360, %v176
        %v362 = vpop.permute.xlu0 %361
        %v364 = vlaneseq
        %v365 = vshrl.u32 %v364, 7
        %v366 = vsub.s32 2, %v365
        %v367 = vrot.slane %v334, %v366
        %v368 = vmul.f32 %v362, %v367
        %v369 = vadd.f32 %v359, %v368
        %370 = vset.pattern.permute.xlu0 3
        %371 = vperm.xlu0 %370, %v176
        %v372 = vpop.permute.xlu0 %371
        %v374 = vlaneseq
        %v375 = vshrl.u32 %v374, 7
        %v376 = vsub.s32 3, %v375
        %v377 = vrot.slane %v334, %v376
        %v378 = vmul.f32 %v372, %v377
        %v379 = vadd.f32 %v369, %v378
        %v380 = vmul.f32 %v379, 0.5
        %v381 = vtanh.pop %v380
        %v382 = vadd.f32 %v381, 1.0
        %v383 = vmul.f32 %v382, 0.5
        %384 = vst [vmem:[%s172] sm:$0x1] %v383
        %s385 = sand.u32 %s75, 1
        %s386 = scalar_lea.sflag [#allocation4], %s385
        %s387 = sand.u32 %s75, 1
        %s388 = scalar_lea.vmem [#allocation7], %s387
        // Predicated region
        $region37: #{tpu_custom_call.1} parent=27 // pred_check
          %p389 = pneg %p85
        $region38: #{tpu_custom_call.1} parent=27 // pred_check_branch
          %391 = sbr.rel (%p389) target = $region40
        $region39: #{tpu_custom_call.1} parent=27 // pred_region
          %s393 = ssub.s32 16, 16
          %394 = vsyncadd %s386, %s393
          %s395 = smul.addr %s20, 16
          %s396 = scalar_lea.hbm %s2, %s395
          %s398 = sshll.u32 %s388, 4
          %s399 = int_to_ptr.vmem [resolvable:$true] %s398
          %401 = dma.vmem_to_hbm [thread:$0]  %s399, 16, %s396, %s386
        $region40: #{tpu_custom_call.1} parent=27 // pred_fallthru
          _
      $region28: #{tpu_custom_call.1} parent=5 // pred_fallthru
        _
      %p402 = scmp.le.s32.totalorder 2, %s15
      // Predicated region
      $region41: #{tpu_custom_call.1} parent=5 // pred_check
        %p403 = pneg %p402
      $region42: #{tpu_custom_call.1} parent=5 // pred_check_branch
        %405 = sbr.rel (%p403) target = $region44
      $region43: #{tpu_custom_call.1} parent=5 // pred_region
        %s406 = ssub.s32 %s15, 2
        // Predicated region
        $region45: #{tpu_custom_call.1} parent=43 // pred_check
          %p407 = pneg %p91
        $region46: #{tpu_custom_call.1} parent=43 // pred_check_branch
          %409 = sbr.rel (%p407) target = $region48
        $region47: #{tpu_custom_call.1} parent=43 // pred_region
          %s410 = sand.u32 %s76, 1
          %s411 = scalar_lea.sflag [#allocation4], %s410
          %s412 = sand.u32 %s76, 1
          %s413 = scalar_lea.vmem [#allocation7], %s412
          %414 = dma.done %s411, 16
        $region48: #{tpu_custom_call.1} parent=43 // pred_fallthru
          _
      $region44: #{tpu_custom_call.1} parent=5 // pred_fallthru
        _
    $region6: #{tpu_custom_call.1} parent=1 // loop_footer
      %s19 = sadd.s32 1, %s15
    $region7: #{tpu_custom_call.1} parent=1 // loop_footer_branch
      %14 = sbr.rel target = $region3
    $region8: #{tpu_custom_call.1} parent=1 // loop_exit
      _
    %415 = vsyncpa [#allocation3], 1
    %s416 = scalar_lea.sflag [#allocation3], 1
    %417 = vsyncpa %s416, 1
    %418 = vsyncpa [#allocation6], 1
    %419 = vsyncpa [#allocation4], 1
    %s420 = scalar_lea.sflag [#allocation4], 1
    %421 = vsyncpa %s420, 1

</llo_original>
